<compile_context>
chip_gen: v7x
topology: tpu7x:2x2x1
jax: 0.10.0
libtpu: 0.0.40
codegen_flags: <defaults>
</compile_context>

<pallas_src>
import jax
import jax.numpy as jnp
from jax.experimental import pallas as pl
from jax.experimental.pallas import tpu as pltpu


# -----------------------------------------------------------------------------
# Fused kernel: im2col-matmul conv + bias + ReLU, one batch element per step.
# -----------------------------------------------------------------------------
def _conv_relu_kernel(p_ref, w_ref, b_ref, o_ref):
    # p_ref: (1, M, Kpad)   im2col patches for one image (M = Hout*Wout)
    # w_ref: (Kpad, Cout)   VMEM-resident weights (constant block index)
    # b_ref: (1, Cout)      bias
    # o_ref: (1, M, Cout)   lane-dense output block
    acc = jnp.dot(p_ref[0], w_ref[...], preferred_element_type=jnp.float32)
    acc = acc + b_ref[0][None, :]
    o_ref[0] = jnp.maximum(acc, 0.0).astype(o_ref.dtype)


# -----------------------------------------------------------------------------
# Wrapper
# -----------------------------------------------------------------------------
def conv_layer_forward(x_nchw, weight_oihw, bias):
    """F.relu(Conv2d(1, Cout, K, stride=1)(x)) -- returns NCHW like PyTorch."""
    B, c_in, H, W = x_nchw.shape
    c_out, c_in2, K, K2 = weight_oihw.shape
    assert c_in == 1 and c_in2 == 1 and K == K2
    h_out, w_out = H - K + 1, W - K + 1
    m = h_out * w_out
    kk = K * K
    kk_pad = ((kk + 127) // 128) * 128          # 81 -> 128 (aligned contraction)

    # ---- layout plumbing (plain JAX glue, fused by XLA) ----
    x_bhw = x_nchw[:, 0]                                            # (B, H, W)
    # im2col: tap index = kh*K + kw (matches the weight relayout below)
    patches = jnp.stack(
        [x_bhw[:, kh:kh + h_out, kw:kw + w_out]
         for kh in range(K) for kw in range(K)],
        axis=-1)                                                    # (B, Hout, Wout, K*K)
    patches = patches.reshape(B, m, kk)
    patches = jnp.pad(patches, ((0, 0), (0, 0), (0, kk_pad - kk)))  # zero-pad taps

    w_tc = weight_oihw[:, 0].reshape(c_out, kk).T                   # (K*K, Cout)
    w_tc = jnp.pad(w_tc, ((0, kk_pad - kk), (0, 0)))                # (Kpad, Cout), zero rows
    b_1c = bias.reshape(1, c_out)

    out_bmc = pl.pallas_call(
        _conv_relu_kernel,
        out_shape=jax.ShapeDtypeStruct((B, m, c_out), x_nchw.dtype),
        grid=(B,),
        in_specs=[
            pl.BlockSpec((1, m, kk_pad), lambda b: (b, 0, 0)),
            # Constant block index => weights fetched once, VMEM-resident.
            pl.BlockSpec((kk_pad, c_out), lambda b: (0, 0)),
            pl.BlockSpec((1, c_out), lambda b: (0, 0)),
        ],
        out_specs=pl.BlockSpec((1, m, c_out), lambda b: (b, 0, 0)),
        compiler_params=pltpu.CompilerParams(
            dimension_semantics=("parallel",)),     # B=2 -> one image per v7x TC
    )(patches, w_tc, b_1c)

    # Single small permute + reshape back to PyTorch NCHW.
    return jnp.transpose(out_bmc, (0, 2, 1)).reshape(B, c_out, h_out, w_out)


# -----------------------------------------------------------------------------
# Pure-JAX reference (mirrors the PyTorch forward).
# -----------------------------------------------------------------------------
def reference_forward(x_nchw, weight_oihw, bias):
    y = jax.lax.conv_general_dilated(
        x_nchw, weight_oihw, window_strides=(1, 1), padding="VALID",
        dimension_numbers=("NCHW", "OIHW", "NCHW"))
    return jax.nn.relu(y + bias[None, :, None, None])


if __name__ == "__main__":
    B, C_in, H, W = 2, 1, 16, 16             # small spatial, consistent with k=9 stride=1
    C_out, K = 256, 9                         # module spec: Conv2d(1, 256, kernel_size=9)

    key = jax.random.PRNGKey(0)
    kx, kw, kb = jax.random.split(key, 3)

    x = jax.random.normal(kx, (B, C_in, H, W), dtype=jnp.float32)
    fan_in = C_in * K * K
    weight = jax.random.normal(kw, (C_out, C_in, K, K), dtype=jnp.float32) * (1.0 / fan_in) ** 0.5
    bias = jax.random.uniform(kb, (C_out,), dtype=jnp.float32,
                              minval=-(1.0 / fan_in) ** 0.5, maxval=(1.0 / fan_in) ** 0.5)

    y = conv_layer_forward(x, weight, bias)
    y = jax.block_until_ready(y)

    y_ref = reference_forward(x, weight, bias)
    assert y.shape == (B, C_out, H - K + 1, W - K + 1)
    err = float(jnp.max(jnp.abs(y - y_ref)) / (jnp.max(jnp.abs(y_ref)) + 1e-12))
    assert err < 1e-3, f"max relative error {err}"

    print("KERNEL_OK")
</pallas_src>

<mosaic_0001>
module attributes {stable_mosaic.version = 11 : i64} {
  func.func @_conv_relu_kernel(%arg0: i32, %arg1: memref<1x64x128xf32, #tpu.memory_space<vmem>>, %arg2: memref<128x256xf32, #tpu.memory_space<vmem>>, %arg3: memref<1x256xf32, #tpu.memory_space<vmem>>, %arg4: memref<1x64x256xf32, #tpu.memory_space<vmem>>) attributes {dimension_semantics = [#tpu.dimension_semantics<parallel>], iteration_bounds = array<i64: 2>, scalar_prefetch = 0 : i64, scratch_operands = 0 : i64, tpu.core_type = #tpu.core_type<tc>, window_params = [{transform_indices = @transform_0, window_bounds = array<i64: 1, 64, 128>}, {pipeline_mode = #tpu.pipeline_mode<synchronous>, transform_indices = @transform_1, window_bounds = array<i64: 128, 256>}, {pipeline_mode = #tpu.pipeline_mode<synchronous>, transform_indices = @transform_2, window_bounds = array<i64: 1, 256>}, {transform_indices = @transform_3, window_bounds = array<i64: 1, 64, 256>}]} {
    %c0 = arith.constant 0 : index
    %c0_0 = arith.constant 0 : index
    %c0_1 = arith.constant 0 : index
    %0 = vector.load %arg1[%c0, %c0_0, %c0_1] : memref<1x64x128xf32, #tpu.memory_space<vmem>>, vector<1x64x128xf32>
    %1 = vector.shape_cast %0 : vector<1x64x128xf32> to vector<64x128xf32>
    %c0_2 = arith.constant 0 : index
    %c0_3 = arith.constant 0 : index
    %2 = vector.load %arg2[%c0_2, %c0_3] : memref<128x256xf32, #tpu.memory_space<vmem>>, vector<128x256xf32>
    %cst = arith.constant dense<0.000000e+00> : vector<64x256xf32>
    %3 = tpu.matmul %1, %2, %cst {dimension_numbers = #tpu.dot_dimension_numbers<[1], [0], [0], [1], [0, 0, 1, 1], [], []>} : vector<64x128xf32>, vector<128x256xf32>, vector<64x256xf32> -> vector<64x256xf32>
    %c0_4 = arith.constant 0 : index
    %c0_5 = arith.constant 0 : index
    %4 = vector.load %arg3[%c0_4, %c0_5] : memref<1x256xf32, #tpu.memory_space<vmem>>, vector<1x256xf32>
    %5 = vector.shape_cast %4 : vector<1x256xf32> to vector<256xf32>
    %6 = vector.shape_cast %5 : vector<256xf32> to vector<1x256xf32>
    %7 = vector.broadcast %6 : vector<1x256xf32> to vector<64x256xf32>
    %8 = arith.addf %3, %7 : vector<64x256xf32>
    %cst_6 = arith.constant 0.000000e+00 : f32
    %9 = vector.broadcast %cst_6 : f32 to vector<64x256xf32>
    %10 = arith.maximumf %8, %9 : vector<64x256xf32>
    %c0_7 = arith.constant 0 : index
    %c0_8 = arith.constant 0 : index
    %c0_9 = arith.constant 0 : index
    %11 = vector.load %arg4[%c0_7, %c0_8, %c0_9] : memref<1x64x256xf32, #tpu.memory_space<vmem>>, vector<1x64x256xf32>
    %12 = vector.shape_cast %11 : vector<1x64x256xf32> to vector<64x256xf32>
    %13 = vector.shape_cast %10 : vector<64x256xf32> to vector<1x64x256xf32>
    tpu.vector_store %arg4[%c0_7, %c0_8, %c0_9], %13 {strides = array<i32>} : memref<1x64x256xf32, #tpu.memory_space<vmem>>, vector<1x64x256xf32>,
    return
  }
  func.func @transform_0(%arg0: i32) -> (i32, i32, i32) {
    %c0_i32 = arith.constant 0 : i32
    %c0_i32_0 = arith.constant 0 : i32
    %c0_i32_1 = arith.constant 0 : i32
    return %arg0, %c0_i32, %c0_i32_0 : i32, i32, i32
  }
  func.func @transform_1(%arg0: i32) -> (i32, i32) {
    %c0_i32 = arith.constant 0 : i32
    %c0_i32_0 = arith.constant 0 : i32
    %c0_i32_1 = arith.constant 0 : i32
    return %c0_i32, %c0_i32_0 : i32, i32
  }
  func.func @transform_2(%arg0: i32) -> (i32, i32) {
    %c0_i32 = arith.constant 0 : i32
    %c0_i32_0 = arith.constant 0 : i32
    %c0_i32_1 = arith.constant 0 : i32
    return %c0_i32, %c0_i32_0 : i32, i32
  }
  func.func @transform_3(%arg0: i32) -> (i32, i32, i32) {
    %c0_i32 = arith.constant 0 : i32
    %c0_i32_0 = arith.constant 0 : i32
    %c0_i32_1 = arith.constant 0 : i32
    return %arg0, %c0_i32, %c0_i32_0 : i32, i32, i32
  }
}

</mosaic_0001>

<llo_original>
// kernel: tpu_custom_call.1
$region0: #{tpu_custom_call.1}
  #allocation0 [shape = 'u32[]', space=smem, size = 0x4, offset = 0x4, fixed_abs, tag = 'smem constant byte address 0x4 - core index']
  #allocation1 [shape = 'u32[144,128]{1,0:T(1,128)}', space=vmem, size = 0x12000, scoped, tag = 'internal scratch']
  %s0 = inlined_call_operand.hbm [shape: f32[2,64,128], index: 0, kind: input, shape index: {}]
  %s1 = inlined_call_operand.hbm [shape: f32[128,256], index: 1, kind: input, shape index: {}]
  %s2 = inlined_call_operand.vmem [shape: f32[1,256], index: 2, kind: input, shape index: {}]
  %s3 = inlined_call_operand.hbm [shape: f32[2,64,256], index: 3, kind: output, shape index: {}]
  %s4 = sld [smem:[#allocation0]]
  $region53: #{tpu_custom_call.1} parent=0
    _
  %s6 = ssub.s32 1, %s4
  %s7 = scalar_select 0, %s6, %s4
  $region1: #{tpu_custom_call.1} parent=0
    #allocation2 [shape = 'u8[65536]{0}', space=vmem, size = 0x10000, scoped, tag = 'input window, operand 0']
    #allocation3 [shape = 's32[2]{0}', space=sflag, size = 0x8, scoped, tag = 'scoped memory for tpu_custom_call.1']
    #allocation4 [shape = 's32[2]{0}', space=sflag, size = 0x8, scoped, tag = 'scoped memory for tpu_custom_call.1']
    #allocation5 [shape = 'u8[131072]{0}', space=vmem, size = 0x20000, scoped, tag = 'input window, operand 1, single buffered']
    #allocation6 [shape = 's32[1]{0}', space=sflag, size = 0x4, scoped, tag = 'scoped memory for tpu_custom_call.1']
    #allocation7 [shape = 'u8[131072]{0}', space=vmem, size = 0x20000, scoped, tag = 'output window, operand 0']
    %8 = vsyncpa [#allocation3], 0
    %s9 = scalar_lea.sflag [#allocation3], 1
    %10 = vsyncpa %s9, 0
    %11 = vsyncpa [#allocation6], 0
    %12 = vsyncpa [#allocation4], 0
    %s13 = scalar_lea.sflag [#allocation4], 1
    %14 = vsyncpa %s13, 0
    loop: start=0, step=1, limit=4
    $region2: #{tpu_custom_call.1} parent=1 // loop_pre_header
      _
    $region3: #{tpu_custom_call.1} parent=1 // loop_header
      %s16 = sphi 0, %s20
      %p17 = scmp.ge.s32.totalorder %s16, 4
      %s26 = sphi 0, %s28
      %s29 = sphi 0, %s26
      %s30 = sphi 0, %s29
      %s46 = sphi 0, %s30
      %s50 = sphi 0, %s50
      %s52 = sphi 0, %s50
      %s53 = sphi 0, %s52
      %s67 = sphi 0, %s53
      %s71 = sphi 0, %s71
      %s73 = sphi 0, %s71
      %s74 = sphi 0, %s73
      %s88 = sphi 0, %s74
      %s94 = sphi 0, %s96
      %s97 = sphi 0, %s94
      %s98 = sphi 0, %s97
      %s114 = sphi 0, %s98
    $region4: #{tpu_custom_call.1} parent=1 // loop_header_branch
      %19 = sbr.rel (%p17) target = $region8
    $region5: #{tpu_custom_call.1} parent=1 // loop_body
      %s21 = ssub.s32 %s16, 1
      %s22 = ssub.s32 %s16, 2
      %s23 = sadd.s32 %s16, 1
      %s24 = ssub.s32 %s16, %s23
      %p25 = scmp.eq.s32.totalorder %s24, 0
      %s27 = sadd.s32 %s26, 1
      %s28 = scalar_select %p25, %s26, %s27
      %p31 = pneg %p25
      %p32 = scmp.eq.s32.totalorder %s16, 1
      %p33 = por %p31, %p32
      %p34 = scmp.ne.s32.totalorder %s26, %s29
      %p35 = scmp.eq.s32.totalorder %s16, 0
      %p36 = por %p34, %p35
      %p37 = scmp.ne.s32.totalorder %s26, %s29
      %p38 = scmp.eq.s32.totalorder %s21, 1
      %p39 = por %p37, %p38
      %p40 = scmp.ne.s32.totalorder %s29, %s30
      %p41 = scmp.eq.s32.totalorder %s21, 0
      %p42 = por %p40, %p41
      %p43 = scmp.ne.s32.totalorder %s29, %s30
      %p44 = scmp.eq.s32.totalorder %s22, 1
      %p45 = por %p43, %p44
      %p47 = scmp.ne.s32.totalorder %s30, %s46
      %p48 = scmp.eq.s32.totalorder %s22, 0
      %p49 = por %p47, %p48
      %s51 = sadd.s32 %s50, 1
      %p54 = scmp.eq.s32.totalorder %s16, 1
      %p55 = scmp.ne.s32.totalorder %s50, %s52
      %p56 = scmp.eq.s32.totalorder %s16, 0
      %p57 = por %p55, %p56
      %p58 = scmp.ne.s32.totalorder %s50, %s52
      %p59 = scmp.eq.s32.totalorder %s21, 1
      %p60 = por %p58, %p59
      %p61 = scmp.ne.s32.totalorder %s52, %s53
      %p62 = scmp.eq.s32.totalorder %s21, 0
      %p63 = por %p61, %p62
      %p64 = scmp.ne.s32.totalorder %s52, %s53
      %p65 = scmp.eq.s32.totalorder %s22, 1
      %p66 = por %p64, %p65
      %p68 = scmp.ne.s32.totalorder %s53, %s67
      %p69 = scmp.eq.s32.totalorder %s22, 0
      %p70 = por %p68, %p69
      %s72 = sadd.s32 %s71, 1
      %p75 = scmp.eq.s32.totalorder %s16, 1
      %p76 = scmp.ne.s32.totalorder %s71, %s73
      %p77 = scmp.eq.s32.totalorder %s16, 0
      %p78 = por %p76, %p77
      %p79 = scmp.ne.s32.totalorder %s71, %s73
      %p80 = scmp.eq.s32.totalorder %s21, 1
      %p81 = por %p79, %p80
      %p82 = scmp.ne.s32.totalorder %s73, %s74
      %p83 = scmp.eq.s32.totalorder %s21, 0
      %p84 = por %p82, %p83
      %p85 = scmp.ne.s32.totalorder %s73, %s74
      %p86 = scmp.eq.s32.totalorder %s22, 1
      %p87 = por %p85, %p86
      %p89 = scmp.ne.s32.totalorder %s74, %s88
      %p90 = scmp.eq.s32.totalorder %s22, 0
      %p91 = por %p89, %p90
      %s92 = ssub.s32 %s16, %s23
      %p93 = scmp.eq.s32.totalorder %s92, 0
      %s95 = sadd.s32 %s94, 1
      %s96 = scalar_select %p93, %s94, %s95
      %p99 = pneg %p93
      %p100 = scmp.eq.s32.totalorder %s16, 1
      %p101 = por %p99, %p100
      %p102 = scmp.ne.s32.totalorder %s94, %s97
      %p103 = scmp.eq.s32.totalorder %s16, 0
      %p104 = por %p102, %p103
      %p105 = scmp.ne.s32.totalorder %s94, %s97
      %p106 = scmp.eq.s32.totalorder %s21, 1
      %p107 = por %p105, %p106
      %p108 = scmp.ne.s32.totalorder %s97, %s98
      %p109 = scmp.eq.s32.totalorder %s21, 0
      %p110 = por %p108, %p109
      %p111 = scmp.ne.s32.totalorder %s97, %s98
      %p112 = scmp.eq.s32.totalorder %s22, 1
      %p113 = por %p111, %p112
      %p115 = scmp.ne.s32.totalorder %s98, %s114
      %p116 = scmp.eq.s32.totalorder %s22, 0
      %p117 = por %p115, %p116
      %p118 = scmp.le.s32.totalorder 1, %s16
      %p119 = scmp.lt.s32.totalorder %s16, 3
      %p120 = pnand %p118, %p119
      %p121 = pneg %p120
      // Predicated region
      $region9: #{tpu_custom_call.1} parent=5 // pred_check
        _
      $region10: #{tpu_custom_call.1} parent=5 // pred_check_branch
        %123 = sbr.rel (%p120) target = $region12
      $region11: #{tpu_custom_call.1} parent=5 // pred_region
        %s124 = ssub.s32 %s16, 1
        // Predicated region
        $region13: #{tpu_custom_call.1} parent=11 // pred_check
          %p125 = pneg %p63
        $region14: #{tpu_custom_call.1} parent=11 // pred_check_branch
          %127 = sbr.rel (%p125) target = $region16
        $region15: #{tpu_custom_call.1} parent=11 // pred_region
          %s129 = ssub.s32 4096, 4096
          %130 = vsyncadd [#allocation6], %s129
          %s131 = sshll.u32 [#allocation5], 4
          %s132 = int_to_ptr.vmem [resolvable:$true] %s131
          %137 = dma.hbm_to_vmem [thread:$0]  %s1, 4096, %s132, [#allocation6], 256, 256, 16
        $region16: #{tpu_custom_call.1} parent=11 // pred_fallthru
          _
        // Predicated region
        $region17: #{tpu_custom_call.1} parent=11 // pred_check
          %p138 = pneg %p84
        $region18: #{tpu_custom_call.1} parent=11 // pred_check_branch
          %140 = sbr.rel (%p138) target = $region20
        $region19: #{tpu_custom_call.1} parent=11 // pred_region
          _
        $region20: #{tpu_custom_call.1} parent=11 // pred_fallthru
          _
      $region12: #{tpu_custom_call.1} parent=5 // pred_fallthru
        _
      %p141 = scmp.lt.s32.totalorder %s16, 2
      // Predicated region
      $region21: #{tpu_custom_call.1} parent=5 // pred_check
        %p142 = pneg %p141
      $region22: #{tpu_custom_call.1} parent=5 // pred_check_branch
        %144 = sbr.rel (%p142) target = $region24
      $region23: #{tpu_custom_call.1} parent=5 // pred_region
        // Predicated region
        $region25: #{tpu_custom_call.1} parent=23 // pred_check
          %p145 = pneg %p36
        $region26: #{tpu_custom_call.1} parent=23 // pred_check_branch
          %147 = sbr.rel (%p145) target = $region28
        $region27: #{tpu_custom_call.1} parent=23 // pred_region
          %s148 = sand.u32 %s26, 1
          %s149 = scalar_lea.sflag [#allocation3], %s148
          %s150 = sand.u32 %s26, 1
          %s151 = smul.addr %s150, 64
          %s152 = scalar_lea.vmem [#allocation2], %s151
          %s154 = ssub.s32 1024, 1024
          %155 = vsyncadd %s149, %s154
          %s156 = smul.addr %s16, 8
          %s157 = smul.addr %s156, 128
          %s158 = scalar_lea.hbm %s0, %s157
          %s159 = sshll.u32 %s152, 4
          %s160 = int_to_ptr.vmem [resolvable:$true] %s159
          %165 = dma.hbm_to_vmem [thread:$0]  %s158, 1024, %s160, %s149, 128, 128, 8
        $region28: #{tpu_custom_call.1} parent=23 // pred_fallthru
          _
      $region24: #{tpu_custom_call.1} parent=5 // pred_fallthru
        _
      %p166 = scmp.le.s32.totalorder 1, %s16
      %p167 = scmp.lt.s32.totalorder %s16, 3
      %p168 = pnand %p166, %p167
      %p169 = pneg %p168
      // Predicated region
      $region29: #{tpu_custom_call.1} parent=5 // pred_check
        _
      $region30: #{tpu_custom_call.1} parent=5 // pred_check_branch
        %171 = sbr.rel (%p168) target = $region32
      $region31: #{tpu_custom_call.1} parent=5 // pred_region
        %s172 = ssub.s32 %s16, 1
        %s173 = sand.u32 %s29, 1
        %s174 = scalar_lea.sflag [#allocation3], %s173
        %s175 = sand.u32 %s29, 1
        %s176 = smul.addr %s175, 64
        %s177 = scalar_lea.vmem [#allocation2], %s176
        // Predicated region
        $region33: #{tpu_custom_call.1} parent=31 // pred_check
          %p178 = pneg %p42
        $region34: #{tpu_custom_call.1} parent=31 // pred_check_branch
          %180 = sbr.rel (%p178) target = $region36
        $region35: #{tpu_custom_call.1} parent=31 // pred_region
          %181 = dma.done %s174, 1024
        $region36: #{tpu_custom_call.1} parent=31 // pred_fallthru
          _
        // Predicated region
        $region37: #{tpu_custom_call.1} parent=31 // pred_check
          %p182 = pneg %p63
        $region38: #{tpu_custom_call.1} parent=31 // pred_check_branch
          %184 = sbr.rel (%p182) target = $region40
        $region39: #{tpu_custom_call.1} parent=31 // pred_region
          %185 = dma.done [#allocation6], 4096
        $region40: #{tpu_custom_call.1} parent=31 // pred_fallthru
          _
        %s186 = sand.u32 %s29, 1
        %s187 = scalar_lea.sflag [#allocation3], %s186
        %s188 = sand.u32 %s29, 1
        %s189 = smul.addr %s188, 64
        %s190 = scalar_lea.vmem [#allocation2], %s189
        %p191 = pneg %p42
        %p192 = pneg %p39
        %p193 = pneg %p63
        %p194 = pneg %p60
        %p195 = pneg %p84
        %p196 = pneg %p81
        %p197 = pneg %p110
        %p198 = pneg %p107
        %s199 = sand.u32 %s97, 1
        %s200 = scalar_lea.sflag [#allocation4], %s199
        %s201 = sand.u32 %s97, 1
        %s202 = smul.addr %s201, 128
        %s203 = scalar_lea.vmem [#allocation7], %s202
        %v204 = vld [vmem:[%s177] sm:$0xff]
        %v205 = vld [vmem:[%s177 + $0x8] sm:$0xff]
        %v206 = vld [vmem:[%s177 + $0x10] sm:$0xff]
        %v207 = vld [vmem:[%s177 + $0x18] sm:$0xff]
        %v208 = vld [vmem:[%s177 + $0x20] sm:$0xff]
        %v209 = vld [vmem:[%s177 + $0x28] sm:$0xff]
        %v210 = vld [vmem:[%s177 + $0x30] sm:$0xff]
        %v211 = vld [vmem:[%s177 + $0x38] sm:$0xff]
        %v212 = vld [vmem:[#allocation5] sm:$0xff]
        %v213 = vld [vmem:[#allocation5 + $0x8] sm:$0xff]
        %v214 = vld [vmem:[#allocation5 + $0x10] sm:$0xff]
        %v215 = vld [vmem:[#allocation5 + $0x18] sm:$0xff]
        %v216 = vld [vmem:[#allocation5 + $0x20] sm:$0xff]
        %v217 = vld [vmem:[#allocation5 + $0x28] sm:$0xff]
        %v218 = vld [vmem:[#allocation5 + $0x30] sm:$0xff]
        %v219 = vld [vmem:[#allocation5 + $0x38] sm:$0xff]
        %v220 = vld [vmem:[#allocation5 + $0x40] sm:$0xff]
        %v221 = vld [vmem:[#allocation5 + $0x48] sm:$0xff]
        %v222 = vld [vmem:[#allocation5 + $0x50] sm:$0xff]
        %v223 = vld [vmem:[#allocation5 + $0x58] sm:$0xff]
        %v224 = vld [vmem:[#allocation5 + $0x60] sm:$0xff]
        %v225 = vld [vmem:[#allocation5 + $0x68] sm:$0xff]
        %v226 = vld [vmem:[#allocation5 + $0x70] sm:$0xff]
        %v227 = vld [vmem:[#allocation5 + $0x78] sm:$0xff]
        %v228 = vld [vmem:[#allocation5 + $0x80] sm:$0xff]
        %v229 = vld [vmem:[#allocation5 + $0x88] sm:$0xff]
        %v230 = vld [vmem:[#allocation5 + $0x90] sm:$0xff]
        %v231 = vld [vmem:[#allocation5 + $0x98] sm:$0xff]
        %v232 = vld [vmem:[#allocation5 + $0xa0] sm:$0xff]
        %v233 = vld [vmem:[#allocation5 + $0xa8] sm:$0xff]
        %v234 = vld [vmem:[#allocation5 + $0xb0] sm:$0xff]
        %v235 = vld [vmem:[#allocation5 + $0xb8] sm:$0xff]
        %v236 = vld [vmem:[#allocation5 + $0xc0] sm:$0xff]
        %v237 = vld [vmem:[#allocation5 + $0xc8] sm:$0xff]
        %v238 = vld [vmem:[#allocation5 + $0xd0] sm:$0xff]
        %v239 = vld [vmem:[#allocation5 + $0xd8] sm:$0xff]
        %v240 = vld [vmem:[#allocation5 + $0xe0] sm:$0xff]
        %v241 = vld [vmem:[#allocation5 + $0xe8] sm:$0xff]
        %v242 = vld [vmem:[#allocation5 + $0xf0] sm:$0xff]
        %v243 = vld [vmem:[#allocation5 + $0xf8] sm:$0xff]
        %v244 = vld [vmem:[%s2] sm:$0x3]
        %v246 = vlaneseq
        %v247 = vshrl.u32 %v246, 7
        %v248 = vsub.s32 0, %v247
        %v249 = vrot.slane %v244, %v248
        %v250 = vlaneseq
        %v251 = vshrl.u32 %v250, 7
        %v252 = vsub.s32 1, %v251
        %v253 = vrot.slane %v244, %v252
        %256 = vmatprep.subr.mxu0 %v213
        %257 = vmatpush1.msra.mxu0 %v212
        %258 = vmatprep.subr.mxu0 %v215
        %259 = vmatpush1.msra.mxu0 %v214
        %260 = vmatprep.subr.mxu0 %v217
        %261 = vmatpush1.msra.mxu0 %v216
        %262 = vmatprep.subr.mxu0 %v219
        %263 = vmatpush1.msra.mxu0 %v218
        %264 = vmatprep.subr.mxu0 %v221
        %265 = vmatpush1.msra.mxu0 %v220
        %266 = vmatprep.subr.mxu0 %v223
        %267 = vmatpush1.msra.mxu0 %v222
        %268 = vmatprep.subr.mxu0 %v225
        %269 = vmatpush1.msra.mxu0 %v224
        %270 = vmatprep.subr.mxu0 %v227
        %271 = vmatpush1.msra.mxu0 %v226
        %272 = vmatprep.subr.mxu0 %v229
        %273 = vmatpush1.msra.mxu0 %v228
        %274 = vmatprep.subr.mxu0 %v231
        %275 = vmatpush1.msra.mxu0 %v230
        %276 = vmatprep.subr.mxu0 %v233
        %277 = vmatpush1.msra.mxu0 %v232
        %278 = vmatprep.subr.mxu0 %v235
        %279 = vmatpush1.msra.mxu0 %v234
        %280 = vmatprep.subr.mxu0 %v237
        %281 = vmatpush1.msra.mxu0 %v236
        %282 = vmatprep.subr.mxu0 %v239
        %283 = vmatpush1.msra.mxu0 %v238
        %284 = vmatprep.subr.mxu0 %v241
        %285 = vmatpush1.msra.mxu0 %v240
        %286 = vmatprep.subr.mxu0 %v243
        %287 = vmatpush1.msra.mxu0 %v242
        %288 = vmatprep.subr.mxu0 0.0
        %289 = vmatpush1.msra.mxu0 0.0
        %290 = vmatprep.subr.mxu0 0.0
        %291 = vmatpush1.msra.mxu0 0.0
        %292 = vmatprep.subr.mxu0 0.0
        %293 = vmatpush1.msra.mxu0 0.0
        %294 = vmatprep.subr.mxu0 0.0
        %295 = vmatpush1.msra.mxu0 0.0
        %296 = vmatprep.subr.mxu0 0.0
        %297 = vmatpush1.msra.mxu0 0.0
        %298 = vmatprep.subr.mxu0 0.0
        %299 = vmatpush1.msra.mxu0 0.0
        %300 = vmatprep.subr.mxu0 0.0
        %301 = vmatpush1.msra.mxu0 0.0
        %302 = vmatprep.subr.mxu0 0.0
        %303 = vmatpush1.msra.mxu0 0.0
        %304 = vmatprep.subr.mxu0 0.0
        %305 = vmatpush1.msra.mxu0 0.0
        %306 = vmatprep.subr.mxu0 0.0
        %307 = vmatpush1.msra.mxu0 0.0
        %308 = vmatprep.subr.mxu0 0.0
        %309 = vmatpush1.msra.mxu0 0.0
        %310 = vmatprep.subr.mxu0 0.0
        %311 = vmatpush1.msra.mxu0 0.0
        %312 = vmatprep.subr.mxu0 0.0
        %313 = vmatpush1.msra.mxu0 0.0
        %314 = vmatprep.subr.mxu0 0.0
        %315 = vmatpush1.msra.mxu0 0.0
        %316 = vmatprep.subr.mxu0 0.0
        %317 = vmatpush1.msra.mxu0 0.0
        %318 = vmatprep.subr.mxu0 0.0
        %319 = vmatpush1.msra.mxu0 0.0
        %320 = vmatprep.mubr.f32.mxu0 0.0
        %321 = vmatmul.mubr.f32.gmra.mrb[0].mxu0 %v204
        %v322 = vpop.f32.mrb[0].mxu0
        %v323 = vadd.f32 %v249, %v322
        %v324 = vpop.f32.mrb[0].mxu0
        %v325 = vadd.f32 %v253, %v324
        %326 = vmatprep.mubr.f32.mxu0 0.0
        %327 = vmatmul.mubr.f32.gmra.mrb[0].mxu0 %v205
        %v328 = vpop.f32.mrb[0].mxu0
        %v329 = vadd.f32 %v249, %v328
        %v330 = vpop.f32.mrb[0].mxu0
        %v331 = vadd.f32 %v253, %v330
        %332 = vmatprep.mubr.f32.mxu0 0.0
        %333 = vmatmul.mubr.f32.gmra.mrb[0].mxu0 %v206
        %v334 = vpop.f32.mrb[0].mxu0
        %v335 = vadd.f32 %v249, %v334
        %v336 = vpop.f32.mrb[0].mxu0
        %v337 = vadd.f32 %v253, %v336
        %338 = vmatprep.mubr.f32.mxu0 0.0
        %339 = vmatmul.mubr.f32.gmra.mrb[0].mxu0 %v207
        %v340 = vpop.f32.mrb[0].mxu0
        %v341 = vadd.f32 %v249, %v340
        %v342 = vpop.f32.mrb[0].mxu0
        %v343 = vadd.f32 %v253, %v342
        %344 = vmatprep.mubr.f32.mxu0 0.0
        %345 = vmatmul.mubr.f32.gmra.mrb[0].mxu0 %v208
        %v346 = vpop.f32.mrb[0].mxu0
        %v347 = vadd.f32 %v249, %v346
        %v348 = vpop.f32.mrb[0].mxu0
        %v349 = vadd.f32 %v253, %v348
        %350 = vmatprep.mubr.f32.mxu0 0.0
        %351 = vmatmul.mubr.f32.gmra.mrb[0].mxu0 %v209
        %v352 = vpop.f32.mrb[0].mxu0
        %v353 = vadd.f32 %v249, %v352
        %v354 = vpop.f32.mrb[0].mxu0
        %v355 = vadd.f32 %v253, %v354
        %356 = vmatprep.mubr.f32.mxu0 0.0
        %357 = vmatmul.mubr.f32.gmra.mrb[0].mxu0 %v210
        %v358 = vpop.f32.mrb[0].mxu0
        %v359 = vadd.f32 %v249, %v358
        %v360 = vpop.f32.mrb[0].mxu0
        %v361 = vadd.f32 %v253, %v360
        %362 = vmatprep.mubr.f32.mxu0 0.0
        %363 = vmatmul.mubr.f32.gmra.mrb[0].mxu0 %v211
        %v364 = vpop.f32.mrb[0].mxu0
        %v365 = vadd.f32 %v249, %v364
        %v366 = vpop.f32.mrb[0].mxu0
        %v367 = vadd.f32 %v253, %v366
        %368 = vdwg.mxu0
        %v369 = vmax.f32 %v323, 0.0
        %v370 = vmax.f32 %v325, 0.0
        %v371 = vmax.f32 %v329, 0.0
        %v372 = vmax.f32 %v331, 0.0
        %v373 = vmax.f32 %v335, 0.0
        %v374 = vmax.f32 %v337, 0.0
        %v375 = vmax.f32 %v341, 0.0
        %v376 = vmax.f32 %v343, 0.0
        %v377 = vmax.f32 %v347, 0.0
        %v378 = vmax.f32 %v349, 0.0
        %v379 = vmax.f32 %v353, 0.0
        %v380 = vmax.f32 %v355, 0.0
        %v381 = vmax.f32 %v359, 0.0
        %v382 = vmax.f32 %v361, 0.0
        %v383 = vmax.f32 %v365, 0.0
        %v384 = vmax.f32 %v367, 0.0
        %385 = vst [vmem:[%s203] sm:$0xff] %v369
        %386 = vst [vmem:[%s203 + $0x8] sm:$0xff] %v370
        %387 = vst [vmem:[%s203 + $0x10] sm:$0xff] %v371
        %388 = vst [vmem:[%s203 + $0x18] sm:$0xff] %v372
        %389 = vst [vmem:[%s203 + $0x20] sm:$0xff] %v373
        %390 = vst [vmem:[%s203 + $0x28] sm:$0xff] %v374
        %391 = vst [vmem:[%s203 + $0x30] sm:$0xff] %v375
        %392 = vst [vmem:[%s203 + $0x38] sm:$0xff] %v376
        %393 = vst [vmem:[%s203 + $0x40] sm:$0xff] %v377
        %394 = vst [vmem:[%s203 + $0x48] sm:$0xff] %v378
        %395 = vst [vmem:[%s203 + $0x50] sm:$0xff] %v379
        %396 = vst [vmem:[%s203 + $0x58] sm:$0xff] %v380
        %397 = vst [vmem:[%s203 + $0x60] sm:$0xff] %v381
        %398 = vst [vmem:[%s203 + $0x68] sm:$0xff] %v382
        %399 = vst [vmem:[%s203 + $0x70] sm:$0xff] %v383
        %400 = vst [vmem:[%s203 + $0x78] sm:$0xff] %v384
        %s401 = sand.u32 %s97, 1
        %s402 = scalar_lea.sflag [#allocation4], %s401
        %s403 = sand.u32 %s97, 1
        %s404 = smul.addr %s403, 128
        %s405 = scalar_lea.vmem [#allocation7], %s404
        // Predicated region
        $region41: #{tpu_custom_call.1} parent=31 // pred_check
          %p406 = pneg %p107
        $region42: #{tpu_custom_call.1} parent=31 // pred_check_branch
          %408 = sbr.rel (%p406) target = $region44
        $region43: #{tpu_custom_call.1} parent=31 // pred_region
          %s410 = ssub.s32 2048, 2048
          %411 = vsyncadd %s402, %s410
          %s412 = smul.addr %s21, 16
          %s413 = smul.addr %s412, 128
          %s414 = scalar_lea.hbm %s3, %s413
          %s415 = sshll.u32 %s405, 4
          %s416 = int_to_ptr.vmem [resolvable:$true] %s415
          %421 = dma.vmem_to_hbm [thread:$0]  %s416, 2048, %s414, %s402, 256, 256, 16
        $region44: #{tpu_custom_call.1} parent=31 // pred_fallthru
          _
      $region32: #{tpu_custom_call.1} parent=5 // pred_fallthru
        _
      %p422 = scmp.le.s32.totalorder 2, %s16
      // Predicated region
      $region45: #{tpu_custom_call.1} parent=5 // pred_check
        %p423 = pneg %p422
      $region46: #{tpu_custom_call.1} parent=5 // pred_check_branch
        %425 = sbr.rel (%p423) target = $region48
      $region47: #{tpu_custom_call.1} parent=5 // pred_region
        %s426 = ssub.s32 %s16, 2
        // Predicated region
        $region49: #{tpu_custom_call.1} parent=47 // pred_check
          %p427 = pneg %p113
        $region50: #{tpu_custom_call.1} parent=47 // pred_check_branch
          %429 = sbr.rel (%p427) target = $region52
        $region51: #{tpu_custom_call.1} parent=47 // pred_region
          %s430 = sand.u32 %s98, 1
          %s431 = scalar_lea.sflag [#allocation4], %s430
          %s432 = sand.u32 %s98, 1
          %s433 = smul.addr %s432, 128
          %s434 = scalar_lea.vmem [#allocation7], %s433
          %435 = dma.done %s431, 2048
        $region52: #{tpu_custom_call.1} parent=47 // pred_fallthru
          _
      $region48: #{tpu_custom_call.1} parent=5 // pred_fallthru
        _
    $region6: #{tpu_custom_call.1} parent=1 // loop_footer
      %s20 = sadd.s32 1, %s16
    $region7: #{tpu_custom_call.1} parent=1 // loop_footer_branch
      %15 = sbr.rel target = $region3
    $region8: #{tpu_custom_call.1} parent=1 // loop_exit
      _
    %436 = vsyncpa [#allocation3], 1
    %s437 = scalar_lea.sflag [#allocation3], 1
    %438 = vsyncpa %s437, 1
    %439 = vsyncpa [#allocation6], 1
    %440 = vsyncpa [#allocation4], 1
    %s441 = scalar_lea.sflag [#allocation4], 1
    %442 = vsyncpa %s441, 1

</llo_original>
